<compile_context>
chip_gen: v7x
topology: tpu7x:2x2x1
jax: 0.10.0
libtpu: 0.0.40
codegen_flags: <defaults>
</compile_context>

<pallas_src>
import functools
import math

import jax
import jax.numpy as jnp
from jax.experimental import pallas as pl
from jax.experimental.pallas import tpu as pltpu


# ----------------------------------------------------------------------------
# Small helpers
# ----------------------------------------------------------------------------
def _round_up(x, m):
    return ((x + m - 1) // m) * m


def _physical_vmem_bytes():
    try:
        info = pltpu.get_tpu_info()
        phys = int(getattr(info, "vmem_capacity_bytes", 0) or 0)
        if phys > 0:
            return phys
    except Exception:
        pass
    return 64 << 20          # conservative fallback = v7x per-TensorCore VMEM


def _default_matmul_dtype():
    # bf16 MXU inputs (with f32 accumulation) are the right default on v6e/v7x;
    # keep f32 elementwise / MXU paths on older parts (no bf16 VPU/EUP on v5e).
    try:
        kind = jax.devices()[0].device_kind.lower()
    except Exception:
        return jnp.float32
    if any(tag in kind for tag in ("v6", "v7", "trillium")):
        return jnp.bfloat16
    return jnp.float32


def _vmem_plan(b, n, hidden_dim, oh, n_heads, node_out_dim, in_itemsize,
               w_itemsize, out_transposed):
    """Pick the batch tile TB from a VMEM budget and a generation-aware limit."""
    phys = _physical_vmem_bytes()
    lane, sub = 128, 8
    n_s = _round_up(max(n, 1), sub)
    h_l = _round_up(hidden_dim, lane)
    oh_l = _round_up(oh, lane)
    nh_p = _round_up(n_heads, sub)

    # Bytes resident in VMEM per batch row for one grid step (f32 unless noted).
    per_row = (2 * n_s * h_l * in_itemsize                 # double-buffered h block
               + 3 * n_s * _round_up(nh_p, lane) * 4       # s / e / p (heads on lanes)
               + nh_p * (2 * oh_l + 2 * h_l) * 4           # qseg, zv, w_s, z
               + nh_p * _round_up(n, lane) * 4             # p^T feeding the Z matmul
               + 2 * h_l * 4)                              # graph-embedding row (+ out block)
    if out_transposed:
        per_row += (2 * _round_up(node_out_dim, sub) * _round_up(n, lane) * 4
                    + n_s * h_l * 4)                       # out block (x2) + h^T for bon dot
    else:
        per_row += 2 * n_s * _round_up(node_out_dim, lane) * 4

    weights = (2 * (2 * _round_up(hidden_dim, sub) * oh_l          # wq, wv
                    + _round_up(oh, sub) * h_l                     # wkT
                    + _round_up(oh, sub) * oh_l) * max(w_itemsize, 2)
               + 2 * nh_p * oh_l * 4)                              # seg_t (f32)

    budget = int(0.55 * phys)
    avail = budget - weights
    tb = 1 if avail < per_row else min(64, avail // per_row)
    tb = max(1, min(int(tb), b))
    if b >= 2:
        tb = min(tb, -(-b // 2))   # >= 2 grid steps: both v7x TCs + pipeline overlap
    need = tb * per_row + weights
    vmem_limit = int(min(0.85 * phys, max(2 * need + (4 << 20), 32 << 20)))
    return int(tb), int(vmem_limit)


# ----------------------------------------------------------------------------
# Shared per-tile decoder math (rank-1 refactor: no k / v materialization)
# ----------------------------------------------------------------------------
def _attention_core(hb, hg, segt_ref, wq_ref, wkT_ref, wv_ref, wmhc_ref, out_ref, *,
                    head_dim, node_out_dim, hidden_dim, matmul_dtype,
                    out_transposed):
    """hb: (TB, N, H) node embeddings, hg: (TB, H) graph embedding."""
    tb, n, _ = hb.shape
    oh = node_out_dim * hidden_dim
    cdt = matmul_dtype

    seg_t = segt_ref[...]                       # (NHp, OH) 0/1 head-segment mask (f32)
    nh_p = seg_t.shape[0]                       # padded head count (multiple of 8)
    wq = wq_ref[...]                            # (H, OH)
    wkT = wkT_ref[...]                          # (OH, H)   pre-transposed W_k
    wv = wv_ref[...]                            # (H, OH)
    wmhc = wmhc_ref[...]                        # (OH, OH)

    hb_c = hb.astype(cdt)                       # cast in-kernel (no HBM round trip)

    # ---- query projection (single query per batch row) ----------------------
    q = jnp.dot(hg.astype(cdt), wq, preferred_element_type=jnp.float32)    # (TB, OH)

    # ---- fold q into W_k: per-(batch, head) score vectors; k is never built --
    #      w_s[b, h, m] = sum_{j in head h} W_k[m, j] * q[b, j]
    qseg = (q[:, None, :] * seg_t[None, :, :]).astype(cdt)                 # (TB, NHp, OH)
    w_s = jnp.dot(qseg.reshape(tb * nh_p, oh), wkT,
                  preferred_element_type=jnp.float32
                  ).reshape(tb, nh_p, hidden_dim)                          # (TB, NHp, H)

    # ---- attention scores over nodes -----------------------------------------
    s = jnp.einsum("bnm,bhm->bnh", hb_c, w_s.astype(cdt),
                   preferred_element_type=jnp.float32)                     # (TB, N, NHp)
    s = s * (1.0 / math.sqrt(head_dim))

    # ---- softmax over nodes (axis=1), f32, max-subtracted --------------------
    m = jnp.max(s, axis=1, keepdims=True)
    e = jnp.exp(s - m)
    denom = jnp.sum(e, axis=1, keepdims=True)
    inv = pl.reciprocal(denom, approx=True)     # EUP seed ...
    inv = inv * (2.0 - denom * inv)             # ... + one Newton step (f32)
    p = e * inv                                                            # (TB, N, NHp)

    # ---- per-head weighted node summary folded through W_v; v is never built -
    z = jnp.einsum("bnh,bnm->bhm", p.astype(cdt), hb_c,
                   preferred_element_type=jnp.float32)                     # (TB, NHp, H)
    zv = jnp.dot(z.reshape(tb * nh_p, hidden_dim).astype(cdt), wv,
                 preferred_element_type=jnp.float32
                 ).reshape(tb, nh_p, oh)                                   # (TB, NHp, OH)
    y = jnp.sum(zv * seg_t[None, :, :], axis=1)                            # (TB, OH)

    # ---- multi-head combine + projection against node embeddings -------------
    mh = jnp.dot(y.astype(cdt), wmhc, preferred_element_type=jnp.float32)  # (TB, OH)
    mh = mh.reshape(tb, node_out_dim, hidden_dim).astype(cdt)              # (TB, O, H)

    if out_transposed:
        out = jnp.einsum("bom,bnm->bon", mh, hb_c,
                         preferred_element_type=jnp.float32)               # (TB, O, N)
    else:
        out = jnp.einsum("bnm,bom->bno", hb_c, mh,
                         preferred_element_type=jnp.float32)               # (TB, N, O)
    out_ref[...] = out.astype(out_ref.dtype)


def _decoder_kernel_aux(h_ref, hg_ref, segt_ref, wq_ref, wkT_ref, wv_ref, wmhc_ref,
                        out_ref, *, head_dim, node_out_dim, hidden_dim,
                        matmul_dtype, out_transposed):
    hb = h_ref[...]                                        # (TB, N, H)
    hg3 = hg_ref[...]                                      # (TB, 1, H)
    hg = hg3.reshape(hg3.shape[0], hg3.shape[2])           # (TB, H)
    _attention_core(hb, hg, segt_ref, wq_ref, wkT_ref, wv_ref, wmhc_ref, out_ref,
                    head_dim=head_dim, node_out_dim=node_out_dim,
                    hidden_dim=hidden_dim, matmul_dtype=matmul_dtype,
                    out_transposed=out_transposed)


def _decoder_kernel_mean(h_ref, segt_ref, wq_ref, wkT_ref, wv_ref, wmhc_ref,
                         out_ref, hg_out_ref, *, head_dim, node_out_dim,
                         hidden_dim, matmul_dtype, out_transposed):
    hb = h_ref[...]                                        # (TB, N, H), original dtype
    # Graph embedding = mean over nodes, computed in-kernel from full-precision h
    # (no extra HBM pass, and no bf16 truncation even when matmul_dtype=bf16).
    hg = jnp.mean(hb.astype(jnp.float32), axis=1)          # (TB, H) f32
    hg_out_ref[...] = hg[:, None, :].astype(hg_out_ref.dtype)
    _attention_core(hb, hg, segt_ref, wq_ref, wkT_ref, wv_ref, wmhc_ref, out_ref,
                    head_dim=head_dim, node_out_dim=node_out_dim,
                    hidden_dim=hidden_dim, matmul_dtype=matmul_dtype,
                    out_transposed=out_transposed)


# ----------------------------------------------------------------------------
# Wrapper: aux-node handling, batch tiling, pallas_call plumbing
# ----------------------------------------------------------------------------
def attention_decoder_forward(h_in, params, *, n_heads, node_out_dim, aux_node,
                              matmul_dtype=None):
    hidden_dim = h_in.shape[-1]
    assert hidden_dim % n_heads == 0, "hidden_dim must be divisible by n_heads"
    oh = node_out_dim * hidden_dim
    head_dim = oh // n_heads
    cdt = (jnp.dtype(matmul_dtype) if matmul_dtype is not None
           else jnp.dtype(_default_matmul_dtype()))

    b = h_in.shape[0]
    if aux_node:
        n = h_in.shape[1] - 1
        h_g_out = h_in[:, -1:, :]          # tiny (B,1,H); returned as-is (torch keeps dim)
        if n % 8 == 0:
            h_src = h_in                   # no HBM round trip: BlockSpec covers rows [0, N)
        else:
            h_src = h_in[:, :-1, :]        # sublane alignment requires a real slice
    else:
        n = h_in.shape[1]
        h_g_out = None
        h_src = h_in

    out_transposed = (n % 128 == 0)        # lane-dense (B, O, N) only when stores are unmasked

    # ---- weights: split / transpose once in the wrapper ---------------------
    wq = params["wq"].astype(cdt)                            # (H, OH)
    wkv = params["wkv"]
    wkT = jnp.swapaxes(wkv[:, :oh], 0, 1).astype(cdt)        # (OH, H)
    wv = wkv[:, oh:].astype(cdt)                             # (H, OH)
    wmhc = params["wmhc"].astype(cdt)                        # (OH, OH)
    nh_p = _round_up(n_heads, 8)                             # pad heads -> clean reshapes
    head_id = jnp.arange(oh, dtype=jnp.int32) // head_dim
    seg_t = (jnp.arange(nh_p, dtype=jnp.int32)[:, None] == head_id[None, :]
             ).astype(jnp.float32)                           # (NHp, OH); padded rows are 0

    # ---- VMEM-budget-driven batch tile + generation-aware vmem limit --------
    tb, vmem_limit = _vmem_plan(b, n, hidden_dim, oh, n_heads, node_out_dim,
                                jnp.dtype(h_in.dtype).itemsize, cdt.itemsize,
                                out_transposed)
    grid = (pl.cdiv(b, tb),)               # boundary block handles B % TB != 0 (prime B, etc.)
    # TODO(synk): for extreme N where even TB=1 blocks exceed VMEM, add a node-axis
    # grid with online softmax; the rank-1 refactor makes whole-N viable otherwise.

    kernel_kw = dict(head_dim=head_dim, node_out_dim=node_out_dim,
                     hidden_dim=hidden_dim, matmul_dtype=cdt,
                     out_transposed=out_transposed)

    def const_spec(shape):
        # Constant block index: fetched once, never re-DMA'd across the grid.
        # TODO(synk): pipeline_mode=pl.Buffered(1) would drop the second buffer copy
        # of these resident weights; omitted pending backend support confirmation.
        return pl.BlockSpec(shape, lambda i: (0, 0))

    weight_specs = [const_spec((nh_p, oh)), const_spec((hidden_dim, oh)),
                    const_spec((oh, hidden_dim)), const_spec((hidden_dim, oh)),
                    const_spec((oh, oh))]
    h_spec = pl.BlockSpec((tb, n, hidden_dim), lambda i: (i, 0, 0))

    if out_transposed:
        out_shape = jax.ShapeDtypeStruct((b, node_out_dim, n), h_in.dtype)
        out_spec = pl.BlockSpec((tb, node_out_dim, n), lambda i: (i, 0, 0))
    else:
        out_shape = jax.ShapeDtypeStruct((b, n, node_out_dim), h_in.dtype)
        out_spec = pl.BlockSpec((tb, n, node_out_dim), lambda i: (i, 0, 0))

    itemsize = jnp.dtype(h_in.dtype).itemsize
    cost = pl.CostEstimate(
        flops=int(2 * b * (hidden_dim * oh                        # q projection
                           + n_heads * oh * hidden_dim            # fold q into W_k
                           + 2 * n * hidden_dim * n_heads         # scores + Z
                           + n_heads * hidden_dim * oh            # Z @ W_v
                           + oh * oh                               # multi-head combine
                           + n * hidden_dim * node_out_dim)),      # output projection
        transcendentals=int(b * n * n_heads),
        bytes_accessed=int(b * n * hidden_dim * itemsize
                           + (3 * hidden_dim * oh + oh * oh + nh_p * oh) * cdt.itemsize
                           + b * n * node_out_dim * itemsize + b * hidden_dim * itemsize),
    )
    cparams = pltpu.CompilerParams(dimension_semantics=("parallel",),
                                   vmem_limit_bytes=vmem_limit)

    if aux_node:
        out_raw = pl.pallas_call(
            functools.partial(_decoder_kernel_aux, **kernel_kw),
            out_shape=out_shape,
            grid_spec=pltpu.PrefetchScalarGridSpec(
                num_scalar_prefetch=0, grid=grid,
                in_specs=[h_spec,
                          pl.BlockSpec((tb, 1, hidden_dim), lambda i: (i, 0, 0)),
                          *weight_specs],
                out_specs=out_spec),
            compiler_params=cparams, cost_estimate=cost,
        )(h_src, h_g_out, seg_t, wq, wkT, wv, wmhc)
    else:
        out_raw, hg3 = pl.pallas_call(
            functools.partial(_decoder_kernel_mean, **kernel_kw),
            out_shape=(out_shape,
                       jax.ShapeDtypeStruct((b, 1, hidden_dim), h_in.dtype)),
            grid_spec=pltpu.PrefetchScalarGridSpec(
                num_scalar_prefetch=0, grid=grid,
                in_specs=[h_spec, *weight_specs],
                out_specs=(out_spec,
                           pl.BlockSpec((tb, 1, hidden_dim), lambda i: (i, 0, 0)))),
            compiler_params=cparams, cost_estimate=cost,
        )(h_src, seg_t, wq, wkT, wv, wmhc)
        h_g_out = hg3[:, 0, :]             # torch mean(dim=1) has no keepdim

    y = jnp.swapaxes(out_raw, 1, 2) if out_transposed else out_raw
    return y, h_g_out


# ----------------------------------------------------------------------------
# Pure-JAX reference (mirrors the PyTorch forward) for verification
# ----------------------------------------------------------------------------
def attention_decoder_reference(h_in, params, *, n_heads, node_out_dim, aux_node):
    hidden_dim = h_in.shape[-1]
    head_dim = node_out_dim * hidden_dim // n_heads
    if aux_node:
        h, h_g = h_in[:, :-1, :], h_in[:, -1:, :]
        hg2 = h_g
    else:
        h = h_in
        h_g = jnp.mean(h_in, axis=1)
        hg2 = h_g[:, None, :]
    B, N, H = h.shape
    OH = node_out_dim * hidden_dim
    q = hg2 @ params["wq"]                                  # (B,1,OH)
    kv = h @ params["wkv"]                                  # (B,N,2OH)
    k, v = kv[..., :OH], kv[..., OH:]
    q = q.reshape(B, 1, n_heads, head_dim).transpose(0, 2, 1, 3)
    k = k.reshape(B, N, n_heads, head_dim).transpose(0, 2, 1, 3)
    v = v.reshape(B, N, n_heads, head_dim).transpose(0, 2, 1, 3)
    s = jnp.einsum("bhqd,bhkd->bhqk", q, k) / math.sqrt(head_dim)
    p = jax.nn.softmax(s, axis=-1)
    y = jnp.einsum("bhqk,bhkd->bhqd", p, v)                 # (B,nh,1,hd)
    y = y.transpose(0, 2, 1, 3).reshape(B, 1, OH)
    mh = (y @ params["wmhc"]).reshape(B, node_out_dim, hidden_dim)
    out = jnp.einsum("boh,bnh->bno", mh, h)                 # (B,N,O)
    return out, h_g


# ----------------------------------------------------------------------------
if __name__ == "__main__":
    B, N, H = 2, 8, 32
    node_out_dim, n_heads = 2, 4
    OH = node_out_dim * H

    key = jax.random.PRNGKey(0)
    k_h, k_q, k_kv, k_mhc, k_aux, k_pb = jax.random.split(key, 6)

    # Deterministic synthetic weights (Linear has bias=False), stored (in, out).
    params = {
        "wq": 0.1 * jax.random.normal(k_q, (H, OH), dtype=jnp.float32),
        "wkv": 0.1 * jax.random.normal(k_kv, (H, 2 * OH), dtype=jnp.float32),
        "wmhc": 0.1 * jax.random.normal(k_mhc, (OH, OH), dtype=jnp.float32),
    }

    # NOTE on tolerances: the kernel restructures the math (rank-1 folding of q
    # into W_k / W_v, EUP reciprocal) and TPU matmuls use default precision, so
    # kernel-vs-reference drift is at the ~1e-2 level; structural bugs would
    # produce O(1) errors, so the checks remain meaningful.

    # --- aux_node = False: graph embedding = mean over nodes (in-kernel) -----
    h_in = jax.random.normal(k_h, (B, N, H), dtype=jnp.float32)
    y, hg = attention_decoder_forward(h_in, params, n_heads=n_heads,
                                      node_out_dim=node_out_dim, aux_node=False,
                                      matmul_dtype=jnp.float32)
    jax.block_until_ready((y, hg))
    y_ref, hg_ref = attention_decoder_reference(h_in, params, n_heads=n_heads,
                                                node_out_dim=node_out_dim,
                                                aux_node=False)
    assert y.shape == (B, N, node_out_dim)
    assert hg.shape == hg_ref.shape
    assert jnp.allclose(y, y_ref, atol=5e-2, rtol=5e-2)
    assert jnp.allclose(hg, hg_ref, atol=1e-4, rtol=1e-5)

    # --- aux_node = True: last node row is the auxiliary / graph token -------
    h_aux = jax.random.normal(k_aux, (B, N + 1, H), dtype=jnp.float32)
    y2, hg2 = attention_decoder_forward(h_aux, params, n_heads=n_heads,
                                        node_out_dim=node_out_dim, aux_node=True,
                                        matmul_dtype=jnp.float32)
    jax.block_until_ready((y2, hg2))
    y2_ref, hg2_ref = attention_decoder_reference(h_aux, params, n_heads=n_heads,
                                                  node_out_dim=node_out_dim,
                                                  aux_node=True)
    assert y2.shape == (B, N, node_out_dim)
    assert hg2.shape == (B, 1, H)
    assert jnp.allclose(y2, y2_ref, atol=5e-2, rtol=5e-2)
    assert jnp.allclose(hg2, hg2_ref, atol=1e-6, rtol=1e-6)

    # --- prime batch size: boundary batch block, no divisor cliff ------------
    h_pb = jax.random.normal(k_pb, (3, N, H), dtype=jnp.float32)
    y3, hg3 = attention_decoder_forward(h_pb, params, n_heads=n_heads,
                                        node_out_dim=node_out_dim, aux_node=False,
                                        matmul_dtype=jnp.float32)
    jax.block_until_ready((y3, hg3))
    y3_ref, hg3_ref = attention_decoder_reference(h_pb, params, n_heads=n_heads,
                                                  node_out_dim=node_out_dim,
                                                  aux_node=False)
    assert y3.shape == (3, N, node_out_dim)
    assert jnp.allclose(y3, y3_ref, atol=5e-2, rtol=5e-2)
    assert jnp.allclose(hg3, hg3_ref, atol=1e-4, rtol=1e-5)

    # --- bf16 MXU fast path (f32 accumulation, softmax and graph mean) -------
    y4, hg4 = attention_decoder_forward(h_in, params, n_heads=n_heads,
                                        node_out_dim=node_out_dim, aux_node=False,
                                        matmul_dtype=jnp.bfloat16)
    jax.block_until_ready((y4, hg4))
    assert jnp.allclose(y4, y_ref, atol=1e-1, rtol=5e-2)
    # graph embedding stays full precision even on the bf16 path
    assert jnp.allclose(hg4, hg_ref, atol=1e-4, rtol=1e-5)

    # --- generation-aware default matmul dtype (bf16 on v6e/v7x, else f32) ---
    y5, _ = attention_decoder_forward(h_in, params, n_heads=n_heads,
                                      node_out_dim=node_out_dim, aux_node=False)
    jax.block_until_ready(y5)
    assert jnp.allclose(y5, y_ref, atol=1e-1, rtol=5e-2)

    print("KERNEL_OK")
</pallas_src>

<mosaic_0001>
module attributes {stable_mosaic.version = 11 : i64} {
  func.func @_decoder_kernel_mean(%arg0: i32, %arg1: memref<1x8x32xf32, #tpu.memory_space<vmem>>, %arg2: memref<8x64xf32, #tpu.memory_space<vmem>>, %arg3: memref<32x64xf32, #tpu.memory_space<vmem>>, %arg4: memref<64x32xf32, #tpu.memory_space<vmem>>, %arg5: memref<32x64xf32, #tpu.memory_space<vmem>>, %arg6: memref<64x64xf32, #tpu.memory_space<vmem>>, %arg7: memref<1x8x2xf32, #tpu.memory_space<vmem>>, %arg8: memref<1x1x32xf32, #tpu.memory_space<vmem>>) attributes {dimension_semantics = [#tpu.dimension_semantics<parallel>], iteration_bounds = array<i64: 2>, scalar_prefetch = 0 : i64, scratch_operands = 0 : i64, tpu.core_type = #tpu.core_type<tc>, window_params = [{transform_indices = @transform_0, window_bounds = array<i64: 1, 8, 32>}, {pipeline_mode = #tpu.pipeline_mode<synchronous>, transform_indices = @transform_1, window_bounds = array<i64: 8, 64>}, {pipeline_mode = #tpu.pipeline_mode<synchronous>, transform_indices = @transform_2, window_bounds = array<i64: 32, 64>}, {pipeline_mode = #tpu.pipeline_mode<synchronous>, transform_indices = @transform_3, window_bounds = array<i64: 64, 32>}, {pipeline_mode = #tpu.pipeline_mode<synchronous>, transform_indices = @transform_4, window_bounds = array<i64: 32, 64>}, {pipeline_mode = #tpu.pipeline_mode<synchronous>, transform_indices = @transform_5, window_bounds = array<i64: 64, 64>}, {transform_indices = @transform_6, window_bounds = array<i64: 1, 8, 2>}, {transform_indices = @transform_7, window_bounds = array<i64: 1, 1, 32>}]} {
    %c0 = arith.constant 0 : index
    %c0_0 = arith.constant 0 : index
    %c0_1 = arith.constant 0 : index
    %0 = vector.load %arg1[%c0, %c0_0, %c0_1] : memref<1x8x32xf32, #tpu.memory_space<vmem>>, vector<1x8x32xf32>
    %cst = arith.constant dense<0.000000e+00> : vector<1x32xf32>
    %1 = vector.multi_reduction <add>, %0, %cst [1] : vector<1x8x32xf32> to vector<1x32xf32>
    %cst_2 = arith.constant 8.000000e+00 : f32
    %2 = vector.broadcast %cst_2 : f32 to vector<1x32xf32>
    %3 = arith.divf %1, %2 : vector<1x32xf32>
    %4 = vector.shape_cast %3 : vector<1x32xf32> to vector<1x1x32xf32>
    %c0_3 = arith.constant 0 : index
    %c0_4 = arith.constant 0 : index
    %c0_5 = arith.constant 0 : index
    %5 = vector.load %arg8[%c0_3, %c0_4, %c0_5] : memref<1x1x32xf32, #tpu.memory_space<vmem>>, vector<1x1x32xf32>
    tpu.vector_store %arg8[%c0_3, %c0_4, %c0_5], %4 {strides = array<i32>} : memref<1x1x32xf32, #tpu.memory_space<vmem>>, vector<1x1x32xf32>,
    %c0_6 = arith.constant 0 : index
    %c0_7 = arith.constant 0 : index
    %6 = vector.load %arg2[%c0_6, %c0_7] : memref<8x64xf32, #tpu.memory_space<vmem>>, vector<8x64xf32>
    %c0_8 = arith.constant 0 : index
    %c0_9 = arith.constant 0 : index
    %7 = vector.load %arg3[%c0_8, %c0_9] : memref<32x64xf32, #tpu.memory_space<vmem>>, vector<32x64xf32>
    %c0_10 = arith.constant 0 : index
    %c0_11 = arith.constant 0 : index
    %8 = vector.load %arg4[%c0_10, %c0_11] : memref<64x32xf32, #tpu.memory_space<vmem>>, vector<64x32xf32>
    %c0_12 = arith.constant 0 : index
    %c0_13 = arith.constant 0 : index
    %9 = vector.load %arg5[%c0_12, %c0_13] : memref<32x64xf32, #tpu.memory_space<vmem>>, vector<32x64xf32>
    %c0_14 = arith.constant 0 : index
    %c0_15 = arith.constant 0 : index
    %10 = vector.load %arg6[%c0_14, %c0_15] : memref<64x64xf32, #tpu.memory_space<vmem>>, vector<64x64xf32>
    %cst_16 = arith.constant dense<0.000000e+00> : vector<1x64xf32>
    %11 = tpu.matmul %3, %7, %cst_16 {dimension_numbers = #tpu.dot_dimension_numbers<[1], [0], [0], [1], [0, 0, 1, 1], [], []>} : vector<1x32xf32>, vector<32x64xf32>, vector<1x64xf32> -> vector<1x64xf32>
    %12 = vector.shape_cast %11 : vector<1x64xf32> to vector<1x1x64xf32>
    %13 = vector.shape_cast %6 : vector<8x64xf32> to vector<1x8x64xf32>
    %14 = vector.broadcast %12 : vector<1x1x64xf32> to vector<1x8x64xf32>
    %15 = arith.mulf %14, %13 : vector<1x8x64xf32>
    %16 = vector.shape_cast %15 : vector<1x8x64xf32> to vector<8x64xf32>
    %cst_17 = arith.constant dense<0.000000e+00> : vector<8x32xf32>
    %17 = tpu.matmul %16, %8, %cst_17 {dimension_numbers = #tpu.dot_dimension_numbers<[1], [0], [0], [1], [0, 0, 1, 1], [], []>} : vector<8x64xf32>, vector<64x32xf32>, vector<8x32xf32> -> vector<8x32xf32>
    %18 = vector.shape_cast %17 : vector<8x32xf32> to vector<1x8x32xf32>
    "tpu.trace_start"() <{level = 10 : i32, message = "bnm,bhm->bnh"}> : () -> ()
    %cst_18 = arith.constant dense<0.000000e+00> : vector<1x8x8xf32>
    %19 = tpu.matmul %0, %18, %cst_18 {dimension_numbers = #tpu.dot_dimension_numbers<[2], [2], [1], [1], [0, 0, 0, 1, 1, 1], [0], [0]>} : vector<1x8x32xf32>, vector<1x8x32xf32>, vector<1x8x8xf32> -> vector<1x8x8xf32>
    "tpu.trace_stop"() : () -> ()
    %cst_19 = arith.constant 2.500000e-01 : f32
    %20 = vector.broadcast %cst_19 : f32 to vector<1x8x8xf32>
    %21 = arith.mulf %19, %20 : vector<1x8x8xf32>
    %cst_20 = arith.constant dense<0xFF800000> : vector<1x8xf32>
    %22 = vector.multi_reduction <maximumf>, %21, %cst_20 [1] : vector<1x8x8xf32> to vector<1x8xf32>
    %23 = vector.shape_cast %22 : vector<1x8xf32> to vector<1x1x8xf32>
    %24 = vector.broadcast %23 : vector<1x1x8xf32> to vector<1x8x8xf32>
    %25 = arith.subf %21, %24 : vector<1x8x8xf32>
    %26 = math.exp %25 : vector<1x8x8xf32>
    %cst_21 = arith.constant dense<0.000000e+00> : vector<1x8xf32>
    %27 = vector.multi_reduction <add>, %26, %cst_21 [1] : vector<1x8x8xf32> to vector<1x8xf32>
    %28 = vector.shape_cast %27 : vector<1x8xf32> to vector<1x1x8xf32>
    %29 = tpu.reciprocal %28 {approx = true} : vector<1x1x8xf32> -> vector<1x1x8xf32>
    %30 = arith.mulf %28, %29 : vector<1x1x8xf32>
    %cst_22 = arith.constant 2.000000e+00 : f32
    %31 = vector.broadcast %cst_22 : f32 to vector<1x1x8xf32>
    %32 = arith.subf %31, %30 : vector<1x1x8xf32>
    %33 = arith.mulf %29, %32 : vector<1x1x8xf32>
    %34 = vector.broadcast %33 : vector<1x1x8xf32> to vector<1x8x8xf32>
    %35 = arith.mulf %26, %34 : vector<1x8x8xf32>
    "tpu.trace_start"() <{level = 10 : i32, message = "bnh,bnm->bhm"}> : () -> ()
    %cst_23 = arith.constant dense<0.000000e+00> : vector<1x8x32xf32>
    %36 = tpu.matmul %35, %0, %cst_23 {dimension_numbers = #tpu.dot_dimension_numbers<[1], [1], [2], [2], [0, 0, 0, 2, 1, 2], [0], [0]>} : vector<1x8x8xf32>, vector<1x8x32xf32>, vector<1x8x32xf32> -> vector<1x8x32xf32>
    "tpu.trace_stop"() : () -> ()
    %37 = vector.shape_cast %36 : vector<1x8x32xf32> to vector<8x32xf32>
    %cst_24 = arith.constant dense<0.000000e+00> : vector<8x64xf32>
    %38 = tpu.matmul %37, %9, %cst_24 {dimension_numbers = #tpu.dot_dimension_numbers<[1], [0], [0], [1], [0, 0, 1, 1], [], []>} : vector<8x32xf32>, vector<32x64xf32>, vector<8x64xf32> -> vector<8x64xf32>
    %39 = vector.shape_cast %38 : vector<8x64xf32> to vector<1x8x64xf32>
    %40 = vector.shape_cast %6 : vector<8x64xf32> to vector<1x8x64xf32>
    %41 = arith.mulf %39, %40 : vector<1x8x64xf32>
    %cst_25 = arith.constant dense<0.000000e+00> : vector<1x64xf32>
    %42 = vector.multi_reduction <add>, %41, %cst_25 [1] : vector<1x8x64xf32> to vector<1x64xf32>
    %cst_26 = arith.constant dense<0.000000e+00> : vector<1x64xf32>
    %43 = tpu.matmul %42, %10, %cst_26 {dimension_numbers = #tpu.dot_dimension_numbers<[1], [0], [0], [1], [0, 0, 1, 1], [], []>} : vector<1x64xf32>, vector<64x64xf32>, vector<1x64xf32> -> vector<1x64xf32>
    %44 = vector.shape_cast %43 : vector<1x64xf32> to vector<1x2x32xf32>
    "tpu.trace_start"() <{level = 10 : i32, message = "bnm,bom->bno"}> : () -> ()
    %cst_27 = arith.constant dense<0.000000e+00> : vector<1x8x2xf32>
    %45 = tpu.matmul %0, %44, %cst_27 {dimension_numbers = #tpu.dot_dimension_numbers<[2], [2], [1], [1], [0, 0, 0, 1, 1, 1], [0], [0]>} : vector<1x8x32xf32>, vector<1x2x32xf32>, vector<1x8x2xf32> -> vector<1x8x2xf32>
    "tpu.trace_stop"() : () -> ()
    %c0_28 = arith.constant 0 : index
    %c0_29 = arith.constant 0 : index
    %c0_30 = arith.constant 0 : index
    %46 = vector.load %arg7[%c0_28, %c0_29, %c0_30] : memref<1x8x2xf32, #tpu.memory_space<vmem>>, vector<1x8x2xf32>
    tpu.vector_store %arg7[%c0_28, %c0_29, %c0_30], %45 {strides = array<i32>} : memref<1x8x2xf32, #tpu.memory_space<vmem>>, vector<1x8x2xf32>,
    return
  }
  func.func @transform_0(%arg0: i32) -> (i32, i32, i32) {
    %c0_i32 = arith.constant 0 : i32
    %c0_i32_0 = arith.constant 0 : i32
    %c0_i32_1 = arith.constant 0 : i32
    return %arg0, %c0_i32, %c0_i32_0 : i32, i32, i32
  }
  func.func @transform_1(%arg0: i32) -> (i32, i32) {
    %c0_i32 = arith.constant 0 : i32
    %c0_i32_0 = arith.constant 0 : i32
    %c0_i32_1 = arith.constant 0 : i32
    return %c0_i32, %c0_i32_0 : i32, i32
  }
  func.func @transform_2(%arg0: i32) -> (i32, i32) {
    %c0_i32 = arith.constant 0 : i32
    %c0_i32_0 = arith.constant 0 : i32
    %c0_i32_1 = arith.constant 0 : i32
    return %c0_i32, %c0_i32_0 : i32, i32
  }
  func.func @transform_3(%arg0: i32) -> (i32, i32) {
    %c0_i32 = arith.constant 0 : i32
    %c0_i32_0 = arith.constant 0 : i32
    %c0_i32_1 = arith.constant 0 : i32
    return %c0_i32, %c0_i32_0 : i32, i32
  }
  func.func @transform_4(%arg0: i32) -> (i32, i32) {
    %c0_i32 = arith.constant 0 : i32
    %c0_i32_0 = arith.constant 0 : i32
    %c0_i32_1 = arith.constant 0 : i32
    return %c0_i32, %c0_i32_0 : i32, i32
  }
  func.func @transform_5(%arg0: i32) -> (i32, i32) {
    %c0_i32 = arith.constant 0 : i32
    %c0_i32_0 = arith.constant 0 : i32
    %c0_i32_1 = arith.constant 0 : i32
    return %c0_i32, %c0_i32_0 : i32, i32
  }
  func.func @transform_6(%arg0: i32) -> (i32, i32, i32) {
    %c0_i32 = arith.constant 0 : i32
    %c0_i32_0 = arith.constant 0 : i32
    %c0_i32_1 = arith.constant 0 : i32
    return %arg0, %c0_i32, %c0_i32_0 : i32, i32, i32
  }
  func.func @transform_7(%arg0: i32) -> (i32, i32, i32) {
    %c0_i32 = arith.constant 0 : i32
    %c0_i32_0 = arith.constant 0 : i32
    %c0_i32_1 = arith.constant 0 : i32
    return %arg0, %c0_i32, %c0_i32_0 : i32, i32, i32
  }
}

</mosaic_0001>

<llo_original>
// kernel: tpu_custom_call.1
$region0: #{tpu_custom_call.1}
  #allocation0 [shape = 'u32[]', space=smem, size = 0x4, offset = 0x4, fixed_abs, tag = 'smem constant byte address 0x4 - core index']
  #allocation1 [shape = 'u32[144,128]{1,0:T(1,128)}', space=vmem, size = 0x12000, scoped, tag = 'internal scratch']
  %s0 = inlined_call_operand.vmem [shape: f32[2,8,32], index: 0, kind: input, shape index: {}]
  %s1 = inlined_call_operand.hbm [shape: f32[8,64], index: 1, kind: input, shape index: {}]
  %s2 = inlined_call_operand.vmem [shape: f32[32,64], index: 2, kind: input, shape index: {}]
  %s3 = inlined_call_operand.vmem [shape: f32[64,32], index: 3, kind: input, shape index: {}]
  %s4 = inlined_call_operand.hbm [shape: f32[32,64], index: 4, kind: input, shape index: {}]
  %s5 = inlined_call_operand.vmem [shape: f32[64,64], index: 5, kind: input, shape index: {}]
  %s6 = inlined_call_operand.vmem [shape: f32[2,8,2], index: 6, kind: output, shape index: {0}]
  %s7 = inlined_call_operand.hbm [shape: f32[2,1,32], index: 7, kind: output, shape index: {1}]
  %8 = xla_tuple %s6, %s7
  %s9 = sld [smem:[#allocation0]]
  $region73: #{tpu_custom_call.1} parent=0
    _
  %s11 = ssub.s32 1, %s9
  %s12 = scalar_select 0, %s11, %s9
  $region1: #{tpu_custom_call.1} parent=0
    #allocation2 [shape = 'u8[4096]{0}', space=vmem, size = 0x1000, scoped, tag = 'input window, operand 1, single buffered']
    #allocation3 [shape = 's32[2]{0}', space=sflag, size = 0x8, scoped, tag = 'scoped memory for tpu_custom_call.1']
    #allocation4 [shape = 's32[2]{0}', space=sflag, size = 0x8, scoped, tag = 'scoped memory for tpu_custom_call.1']
    #allocation5 [shape = 'u8[16384]{0}', space=vmem, size = 0x4000, scoped, tag = 'input window, operand 4, single buffered']
    #allocation6 [shape = 's32[1]{0}', space=sflag, size = 0x4, scoped, tag = 'scoped memory for tpu_custom_call.1']
    #allocation7 [shape = 'u8[1024]{0}', space=vmem, size = 0x400, scoped, tag = 'output window, operand 1']
    %13 = vsyncpa [#allocation3], 0
    %14 = vsyncpa [#allocation6], 0
    %15 = vsyncpa [#allocation4], 0
    %s16 = scalar_lea.sflag [#allocation4], 1
    %17 = vsyncpa %s16, 0
    loop: start=0, step=1, limit=4
    $region2: #{tpu_custom_call.1} parent=1 // loop_pre_header
      _
    $region3: #{tpu_custom_call.1} parent=1 // loop_header
      %s19 = sphi 0, %s23
      %p20 = scmp.ge.s32.totalorder %s19, 4
      %s29 = sphi 0, %s31
      %s32 = sphi 0, %s29
      %s33 = sphi 0, %s32
      %s49 = sphi 0, %s33
      %s53 = sphi 0, %s53
      %s55 = sphi 0, %s53
      %s56 = sphi 0, %s55
      %s70 = sphi 0, %s56
      %s74 = sphi 0, %s74
      %s76 = sphi 0, %s74
      %s77 = sphi 0, %s76
      %s91 = sphi 0, %s77
      %s95 = sphi 0, %s95
      %s97 = sphi 0, %s95
      %s98 = sphi 0, %s97
      %s112 = sphi 0, %s98
      %s116 = sphi 0, %s116
      %s118 = sphi 0, %s116
      %s119 = sphi 0, %s118
      %s133 = sphi 0, %s119
      %s137 = sphi 0, %s137
      %s139 = sphi 0, %s137
      %s140 = sphi 0, %s139
      %s154 = sphi 0, %s140
      %s160 = sphi 0, %s162
      %s163 = sphi 0, %s160
      %s164 = sphi 0, %s163
      %s180 = sphi 0, %s164
      %s186 = sphi 0, %s188
      %s189 = sphi 0, %s186
      %s190 = sphi 0, %s189
      %s206 = sphi 0, %s190
    $region4: #{tpu_custom_call.1} parent=1 // loop_header_branch
      %22 = sbr.rel (%p20) target = $region8
    $region5: #{tpu_custom_call.1} parent=1 // loop_body
      %s24 = ssub.s32 %s19, 1
      %s25 = ssub.s32 %s19, 2
      %s26 = sadd.s32 %s19, 1
      %s27 = ssub.s32 %s19, %s26
      %p28 = scmp.eq.s32.totalorder %s27, 0
      %s30 = sadd.s32 %s29, 1
      %s31 = scalar_select %p28, %s29, %s30
      %p34 = pneg %p28
      %p35 = scmp.eq.s32.totalorder %s19, 1
      %p36 = por %p34, %p35
      %p37 = scmp.ne.s32.totalorder %s29, %s32
      %p38 = scmp.eq.s32.totalorder %s19, 0
      %p39 = por %p37, %p38
      %p40 = scmp.ne.s32.totalorder %s29, %s32
      %p41 = scmp.eq.s32.totalorder %s24, 1
      %p42 = por %p40, %p41
      %p43 = scmp.ne.s32.totalorder %s32, %s33
      %p44 = scmp.eq.s32.totalorder %s24, 0
      %p45 = por %p43, %p44
      %p46 = scmp.ne.s32.totalorder %s32, %s33
      %p47 = scmp.eq.s32.totalorder %s25, 1
      %p48 = por %p46, %p47
      %p50 = scmp.ne.s32.totalorder %s33, %s49
      %p51 = scmp.eq.s32.totalorder %s25, 0
      %p52 = por %p50, %p51
      %s54 = sadd.s32 %s53, 1
      %p57 = scmp.eq.s32.totalorder %s19, 1
      %p58 = scmp.ne.s32.totalorder %s53, %s55
      %p59 = scmp.eq.s32.totalorder %s19, 0
      %p60 = por %p58, %p59
      %p61 = scmp.ne.s32.totalorder %s53, %s55
      %p62 = scmp.eq.s32.totalorder %s24, 1
      %p63 = por %p61, %p62
      %p64 = scmp.ne.s32.totalorder %s55, %s56
      %p65 = scmp.eq.s32.totalorder %s24, 0
      %p66 = por %p64, %p65
      %p67 = scmp.ne.s32.totalorder %s55, %s56
      %p68 = scmp.eq.s32.totalorder %s25, 1
      %p69 = por %p67, %p68
      %p71 = scmp.ne.s32.totalorder %s56, %s70
      %p72 = scmp.eq.s32.totalorder %s25, 0
      %p73 = por %p71, %p72
      %s75 = sadd.s32 %s74, 1
      %p78 = scmp.eq.s32.totalorder %s19, 1
      %p79 = scmp.ne.s32.totalorder %s74, %s76
      %p80 = scmp.eq.s32.totalorder %s19, 0
      %p81 = por %p79, %p80
      %p82 = scmp.ne.s32.totalorder %s74, %s76
      %p83 = scmp.eq.s32.totalorder %s24, 1
      %p84 = por %p82, %p83
      %p85 = scmp.ne.s32.totalorder %s76, %s77
      %p86 = scmp.eq.s32.totalorder %s24, 0
      %p87 = por %p85, %p86
      %p88 = scmp.ne.s32.totalorder %s76, %s77
      %p89 = scmp.eq.s32.totalorder %s25, 1
      %p90 = por %p88, %p89
      %p92 = scmp.ne.s32.totalorder %s77, %s91
      %p93 = scmp.eq.s32.totalorder %s25, 0
      %p94 = por %p92, %p93
      %s96 = sadd.s32 %s95, 1
      %p99 = scmp.eq.s32.totalorder %s19, 1
      %p100 = scmp.ne.s32.totalorder %s95, %s97
      %p101 = scmp.eq.s32.totalorder %s19, 0
      %p102 = por %p100, %p101
      %p103 = scmp.ne.s32.totalorder %s95, %s97
      %p104 = scmp.eq.s32.totalorder %s24, 1
      %p105 = por %p103, %p104
      %p106 = scmp.ne.s32.totalorder %s97, %s98
      %p107 = scmp.eq.s32.totalorder %s24, 0
      %p108 = por %p106, %p107
      %p109 = scmp.ne.s32.totalorder %s97, %s98
      %p110 = scmp.eq.s32.totalorder %s25, 1
      %p111 = por %p109, %p110
      %p113 = scmp.ne.s32.totalorder %s98, %s112
      %p114 = scmp.eq.s32.totalorder %s25, 0
      %p115 = por %p113, %p114
      %s117 = sadd.s32 %s116, 1
      %p120 = scmp.eq.s32.totalorder %s19, 1
      %p121 = scmp.ne.s32.totalorder %s116, %s118
      %p122 = scmp.eq.s32.totalorder %s19, 0
      %p123 = por %p121, %p122
      %p124 = scmp.ne.s32.totalorder %s116, %s118
      %p125 = scmp.eq.s32.totalorder %s24, 1
      %p126 = por %p124, %p125
      %p127 = scmp.ne.s32.totalorder %s118, %s119
      %p128 = scmp.eq.s32.totalorder %s24, 0
      %p129 = por %p127, %p128
      %p130 = scmp.ne.s32.totalorder %s118, %s119
      %p131 = scmp.eq.s32.totalorder %s25, 1
      %p132 = por %p130, %p131
      %p134 = scmp.ne.s32.totalorder %s119, %s133
      %p135 = scmp.eq.s32.totalorder %s25, 0
      %p136 = por %p134, %p135
      %s138 = sadd.s32 %s137, 1
      %p141 = scmp.eq.s32.totalorder %s19, 1
      %p142 = scmp.ne.s32.totalorder %s137, %s139
      %p143 = scmp.eq.s32.totalorder %s19, 0
      %p144 = por %p142, %p143
      %p145 = scmp.ne.s32.totalorder %s137, %s139
      %p146 = scmp.eq.s32.totalorder %s24, 1
      %p147 = por %p145, %p146
      %p148 = scmp.ne.s32.totalorder %s139, %s140
      %p149 = scmp.eq.s32.totalorder %s24, 0
      %p150 = por %p148, %p149
      %p151 = scmp.ne.s32.totalorder %s139, %s140
      %p152 = scmp.eq.s32.totalorder %s25, 1
      %p153 = por %p151, %p152
      %p155 = scmp.ne.s32.totalorder %s140, %s154
      %p156 = scmp.eq.s32.totalorder %s25, 0
      %p157 = por %p155, %p156
      %s158 = ssub.s32 %s19, %s26
      %p159 = scmp.eq.s32.totalorder %s158, 0
      %s161 = sadd.s32 %s160, 1
      %s162 = scalar_select %p159, %s160, %s161
      %p165 = pneg %p159
      %p166 = scmp.eq.s32.totalorder %s19, 1
      %p167 = por %p165, %p166
      %p168 = scmp.ne.s32.totalorder %s160, %s163
      %p169 = scmp.eq.s32.totalorder %s19, 0
      %p170 = por %p168, %p169
      %p171 = scmp.ne.s32.totalorder %s160, %s163
      %p172 = scmp.eq.s32.totalorder %s24, 1
      %p173 = por %p171, %p172
      %p174 = scmp.ne.s32.totalorder %s163, %s164
      %p175 = scmp.eq.s32.totalorder %s24, 0
      %p176 = por %p174, %p175
      %p177 = scmp.ne.s32.totalorder %s163, %s164
      %p178 = scmp.eq.s32.totalorder %s25, 1
      %p179 = por %p177, %p178
      %p181 = scmp.ne.s32.totalorder %s164, %s180
      %p182 = scmp.eq.s32.totalorder %s25, 0
      %p183 = por %p181, %p182
      %s184 = ssub.s32 %s19, %s26
      %p185 = scmp.eq.s32.totalorder %s184, 0
      %s187 = sadd.s32 %s186, 1
      %s188 = scalar_select %p185, %s186, %s187
      %p191 = pneg %p185
      %p192 = scmp.eq.s32.totalorder %s19, 1
      %p193 = por %p191, %p192
      %p194 = scmp.ne.s32.totalorder %s186, %s189
      %p195 = scmp.eq.s32.totalorder %s19, 0
      %p196 = por %p194, %p195
      %p197 = scmp.ne.s32.totalorder %s186, %s189
      %p198 = scmp.eq.s32.totalorder %s24, 1
      %p199 = por %p197, %p198
      %p200 = scmp.ne.s32.totalorder %s189, %s190
      %p201 = scmp.eq.s32.totalorder %s24, 0
      %p202 = por %p200, %p201
      %p203 = scmp.ne.s32.totalorder %s189, %s190
      %p204 = scmp.eq.s32.totalorder %s25, 1
      %p205 = por %p203, %p204
      %p207 = scmp.ne.s32.totalorder %s190, %s206
      %p208 = scmp.eq.s32.totalorder %s25, 0
      %p209 = por %p207, %p208
      %p210 = scmp.le.s32.totalorder 1, %s19
      %p211 = scmp.lt.s32.totalorder %s19, 3
      %p212 = pnand %p210, %p211
      %p213 = pneg %p212
      // Predicated region
      $region9: #{tpu_custom_call.1} parent=5 // pred_check
        _
      $region10: #{tpu_custom_call.1} parent=5 // pred_check_branch
        %215 = sbr.rel (%p212) target = $region12
      $region11: #{tpu_custom_call.1} parent=5 // pred_region
        %s216 = ssub.s32 %s19, 1
        // Predicated region
        $region13: #{tpu_custom_call.1} parent=11 // pred_check
          %p217 = pneg %p66
        $region14: #{tpu_custom_call.1} parent=11 // pred_check_branch
          %219 = sbr.rel (%p217) target = $region16
        $region15: #{tpu_custom_call.1} parent=11 // pred_region
          %s221 = ssub.s32 128, 128
          %222 = vsyncadd [#allocation3], %s221
          %s224 = sshll.u32 [#allocation2], 4
          %s225 = int_to_ptr.vmem [resolvable:$true] %s224
          %227 = dma.hbm_to_vmem [thread:$0]  %s1, 128, %s225, [#allocation3]
        $region16: #{tpu_custom_call.1} parent=11 // pred_fallthru
          _
        // Predicated region
        $region17: #{tpu_custom_call.1} parent=11 // pred_check
          %p228 = pneg %p87
        $region18: #{tpu_custom_call.1} parent=11 // pred_check_branch
          %230 = sbr.rel (%p228) target = $region20
        $region19: #{tpu_custom_call.1} parent=11 // pred_region
          _
        $region20: #{tpu_custom_call.1} parent=11 // pred_fallthru
          _
        // Predicated region
        $region21: #{tpu_custom_call.1} parent=11 // pred_check
          %p231 = pneg %p108
        $region22: #{tpu_custom_call.1} parent=11 // pred_check_branch
          %233 = sbr.rel (%p231) target = $region24
        $region23: #{tpu_custom_call.1} parent=11 // pred_region
          _
        $region24: #{tpu_custom_call.1} parent=11 // pred_fallthru
          _
        // Predicated region
        $region25: #{tpu_custom_call.1} parent=11 // pred_check
          %p234 = pneg %p129
        $region26: #{tpu_custom_call.1} parent=11 // pred_check_branch
          %236 = sbr.rel (%p234) target = $region28
        $region27: #{tpu_custom_call.1} parent=11 // pred_region
          %s238 = ssub.s32 512, 512
          %239 = vsyncadd [#allocation6], %s238
          %s240 = sshll.u32 [#allocation5], 4
          %s241 = int_to_ptr.vmem [resolvable:$true] %s240
          %246 = dma.hbm_to_vmem [thread:$0]  %s4, 512, %s241, [#allocation6], 128, 128, 8
        $region28: #{tpu_custom_call.1} parent=11 // pred_fallthru
          _
        // Predicated region
        $region29: #{tpu_custom_call.1} parent=11 // pred_check
          %p247 = pneg %p150
        $region30: #{tpu_custom_call.1} parent=11 // pred_check_branch
          %249 = sbr.rel (%p247) target = $region32
        $region31: #{tpu_custom_call.1} parent=11 // pred_region
          _
        $region32: #{tpu_custom_call.1} parent=11 // pred_fallthru
          _
      $region12: #{tpu_custom_call.1} parent=5 // pred_fallthru
        _
      %p250 = scmp.lt.s32.totalorder %s19, 2
      // Predicated region
      $region33: #{tpu_custom_call.1} parent=5 // pred_check
        %p251 = pneg %p250
      $region34: #{tpu_custom_call.1} parent=5 // pred_check_branch
        %253 = sbr.rel (%p251) target = $region36
      $region35: #{tpu_custom_call.1} parent=5 // pred_region
        // Predicated region
        $region37: #{tpu_custom_call.1} parent=35 // pred_check
          %p254 = pneg %p39
        $region38: #{tpu_custom_call.1} parent=35 // pred_check_branch
          %256 = sbr.rel (%p254) target = $region40
        $region39: #{tpu_custom_call.1} parent=35 // pred_region
          %p257 = scmp.lt.s32.totalorder %s19, 1
          %s258 = scalar_select %p257, %s19, 1
          %s259 = smul.addr %s258, 8
          %s260 = scalar_lea.vmem %s0, %s259
        $region40: #{tpu_custom_call.1} parent=35 // pred_fallthru
          _
      $region36: #{tpu_custom_call.1} parent=5 // pred_fallthru
        _
      %p261 = scmp.le.s32.totalorder 1, %s19
      %p262 = scmp.lt.s32.totalorder %s19, 3
      %p263 = pnand %p261, %p262
      %p264 = pneg %p263
      // Predicated region
      $region41: #{tpu_custom_call.1} parent=5 // pred_check
        _
      $region42: #{tpu_custom_call.1} parent=5 // pred_check_branch
        %266 = sbr.rel (%p263) target = $region44
      $region43: #{tpu_custom_call.1} parent=5 // pred_region
        %s267 = ssub.s32 %s19, 1
        // Predicated region
        $region45: #{tpu_custom_call.1} parent=43 // pred_check
          %p268 = pneg %p66
        $region46: #{tpu_custom_call.1} parent=43 // pred_check_branch
          %270 = sbr.rel (%p268) target = $region48
        $region47: #{tpu_custom_call.1} parent=43 // pred_region
          %271 = dma.done [#allocation3], 128
        $region48: #{tpu_custom_call.1} parent=43 // pred_fallthru
          _
        // Predicated region
        $region49: #{tpu_custom_call.1} parent=43 // pred_check
          %p272 = pneg %p129
        $region50: #{tpu_custom_call.1} parent=43 // pred_check_branch
          %274 = sbr.rel (%p272) target = $region52
        $region51: #{tpu_custom_call.1} parent=43 // pred_region
          %275 = dma.done [#allocation6], 512
        $region52: #{tpu_custom_call.1} parent=43 // pred_fallthru
          _
        %p276 = scmp.lt.s32.totalorder %s24, 1
        %s277 = scalar_select %p276, %s24, 1
        %s278 = smul.addr %s277, 8
        %s279 = scalar_lea.vmem %s0, %s278
        %p280 = pneg %p45
        %p281 = pneg %p42
        %p282 = pneg %p66
        %p283 = pneg %p63
        %p284 = pneg %p87
        %p285 = pneg %p84
        %p286 = pneg %p108
        %p287 = pneg %p105
        %p288 = pneg %p129
        %p289 = pneg %p126
        %p290 = pneg %p150
        %p291 = pneg %p147
        %p292 = pneg %p176
        %p293 = pneg %p173
        %p294 = scmp.lt.s32.totalorder %s24, 1
        %s295 = scalar_select %p294, %s24, 1
        %s296 = smul.addr %s295, 8
        %s297 = scalar_lea.vmem %s6, %s296
        %p298 = pneg %p202
        %p299 = pneg %p199
        %s300 = sand.u32 %s189, 1
        %s301 = scalar_lea.sflag [#allocation4], %s300
        %s302 = sand.u32 %s189, 1
        %s303 = scalar_lea.vmem [#allocation7], %s302
        %p304 = scmp.lt.s32.totalorder %s24, 1
        %s305 = scalar_select %p304, %s24, 1
        %s306 = smul.addr %s305, 8
        %s307 = scalar_lea.vmem %s0, %s306
        %p308 = scmp.lt.s32.totalorder %s24, 1
        %s309 = scalar_select %p308, %s24, 1
        %s310 = smul.addr %s309, 8
        %s311 = scalar_lea.vmem %s6, %s310
        %v312 = vld [vmem:[%s307] sm:$0xff]
        %vm313 = vcmask 261120
        %v314 = vsel %vm313, %v312, 0.0
        %v315 = vrot.slane %v314, 4
        %v316 = vadd.f32 %v314, %v315
        %v317 = vrot.slane %v316, 2
        %v318 = vadd.f32 %v316, %v317
        %v319 = vrot.slane %v318, 1
        %v320 = vadd.f32 %v318, %v319
        %v321 = vrcp.pop 8.0
        %v322 = vmul.f32 %v320, %v321
        %vm323 = vcmask 253952
        %324 = vst.msk [vmem:[%s303] sm:$0x1] %vm323, %v322
        %v325 = vld [vmem:[#allocation2] sm:$0xff]
        %v326 = vld [vmem:[%s2] sm:$0xff]
        %v327 = vld [vmem:[%s2 + $0x8] sm:$0xff]
        %v328 = vld [vmem:[%s2 + $0x10] sm:$0xff]
        %v329 = vld [vmem:[%s2 + $0x18] sm:$0xff]
        %v330 = vld [vmem:[%s3] sm:$0xff]
        %v331 = vld [vmem:[%s3 + $0x8] sm:$0xff]
        %v332 = vld [vmem:[%s3 + $0x10] sm:$0xff]
        %v333 = vld [vmem:[%s3 + $0x18] sm:$0xff]
        %v334 = vld [vmem:[%s3 + $0x20] sm:$0xff]
        %v335 = vld [vmem:[%s3 + $0x28] sm:$0xff]
        %v336 = vld [vmem:[%s3 + $0x30] sm:$0xff]
        %v337 = vld [vmem:[%s3 + $0x38] sm:$0xff]
        %v338 = vld [vmem:[#allocation5] sm:$0xff]
        %v339 = vld [vmem:[#allocation5 + $0x8] sm:$0xff]
        %v340 = vld [vmem:[#allocation5 + $0x10] sm:$0xff]
        %v341 = vld [vmem:[#allocation5 + $0x18] sm:$0xff]
        %v342 = vld [vmem:[%s5] sm:$0xff]
        %v343 = vld [vmem:[%s5 + $0x8] sm:$0xff]
        %v344 = vld [vmem:[%s5 + $0x10] sm:$0xff]
        %v345 = vld [vmem:[%s5 + $0x18] sm:$0xff]
        %v346 = vld [vmem:[%s5 + $0x20] sm:$0xff]
        %v347 = vld [vmem:[%s5 + $0x28] sm:$0xff]
        %v348 = vld [vmem:[%s5 + $0x30] sm:$0xff]
        %v349 = vld [vmem:[%s5 + $0x38] sm:$0xff]
        %v351 = vsel %vm313, %v322, 0
        %353 = vmatprep.subr.mxu0 0.0
        %354 = vmatpush1.msra.mxu0 %v326
        %355 = vmatprep.subr.mxu0 0.0
        %356 = vmatpush1.msra.mxu0 %v327
        %357 = vmatprep.subr.mxu0 0.0
        %358 = vmatpush1.msra.mxu0 %v328
        %359 = vmatprep.subr.mxu0 0.0
        %360 = vmatpush1.msra.mxu0 %v329
        %361 = vmatprep.subr.mxu0 0.0
        %362 = vmatpush1.msra.mxu0 0.0
        %363 = vmatprep.subr.mxu0 0.0
        %364 = vmatpush1.msra.mxu0 0.0
        %365 = vmatprep.subr.mxu0 0.0
        %366 = vmatpush1.msra.mxu0 0.0
        %367 = vmatprep.subr.mxu0 0.0
        %368 = vmatpush1.msra.mxu0 0.0
        %369 = vmatprep.subr.mxu0 0.0
        %370 = vmatpush1.msra.mxu0 0.0
        %371 = vmatprep.subr.mxu0 0.0
        %372 = vmatpush1.msra.mxu0 0.0
        %373 = vmatprep.subr.mxu0 0.0
        %374 = vmatpush1.msra.mxu0 0.0
        %375 = vmatprep.subr.mxu0 0.0
        %376 = vmatpush1.msra.mxu0 0.0
        %377 = vmatprep.subr.mxu0 0.0
        %378 = vmatpush1.msra.mxu0 0.0
        %379 = vmatprep.subr.mxu0 0.0
        %380 = vmatpush1.msra.mxu0 0.0
        %381 = vmatprep.subr.mxu0 0.0
        %382 = vmatpush1.msra.mxu0 0.0
        %383 = vmatprep.subr.mxu0 0.0
        %384 = vmatpush1.msra.mxu0 0.0
        %385 = vmatprep.subr.mxu0 0.0
        %386 = vmatpush1.msra.mxu0 0.0
        %387 = vmatprep.subr.mxu0 0.0
        %388 = vmatpush1.msra.mxu0 0.0
        %389 = vmatprep.subr.mxu0 0.0
        %390 = vmatpush1.msra.mxu0 0.0
        %391 = vmatprep.subr.mxu0 0.0
        %392 = vmatpush1.msra.mxu0 0.0
        %393 = vmatprep.subr.mxu0 0.0
        %394 = vmatpush1.msra.mxu0 0.0
        %395 = vmatprep.subr.mxu0 0.0
        %396 = vmatpush1.msra.mxu0 0.0
        %397 = vmatprep.subr.mxu0 0.0
        %398 = vmatpush1.msra.mxu0 0.0
        %399 = vmatprep.subr.mxu0 0.0
        %400 = vmatpush1.msra.mxu0 0.0
        %401 = vmatprep.subr.mxu0 0.0
        %402 = vmatpush1.msra.mxu0 0.0
        %403 = vmatprep.subr.mxu0 0.0
        %404 = vmatpush1.msra.mxu0 0.0
        %405 = vmatprep.subr.mxu0 0.0
        %406 = vmatpush1.msra.mxu0 0.0
        %407 = vmatprep.subr.mxu0 0.0
        %408 = vmatpush1.msra.mxu0 0.0
        %409 = vmatprep.subr.mxu0 0.0
        %410 = vmatpush1.msra.mxu0 0.0
        %411 = vmatprep.subr.mxu0 0.0
        %412 = vmatpush1.msra.mxu0 0.0
        %413 = vmatprep.subr.mxu0 0.0
        %414 = vmatpush1.msra.mxu0 0.0
        %415 = vmatprep.subr.mxu0 0.0
        %416 = vmatpush1.msra.mxu0 0.0
        %417 = vmatprep.mubr.f32.mxu0 0.0
        %418 = vmatmul.mubr.f32.gmra.mrb[0].mxu0 %v351
        %v419 = vpop.f32.mrb[0].mxu0
        %v420 = vadd.f32 0.0, %v419
        %v421 = vpop.f32.mrb[0].mxu0
        %422 = vdwg.mxu0
        %v423 = vlaneseq
        %v424 = vshrl.u32 %v423, 7
        %v425 = vsub.s32 0, %v424
        %v426 = vrot.slane %v420, %v425
        %v427 = vmul.f32 %v426, %v325
        %vm428 = vcmask 523264
        %v430 = vsel %vm428, %v427, 0
        %432 = vmatprep.subr.mxu0 0.0
        %433 = vmatpush1.msra.mxu0 %v330
        %434 = vmatprep.subr.mxu0 0.0
        %435 = vmatpush1.msra.mxu0 %v331
        %436 = vmatprep.subr.mxu0 0.0
        %437 = vmatpush1.msra.mxu0 %v332
        %438 = vmatprep.subr.mxu0 0.0
        %439 = vmatpush1.msra.mxu0 %v333
        %440 = vmatprep.subr.mxu0 0.0
        %441 = vmatpush1.msra.mxu0 %v334
        %442 = vmatprep.subr.mxu0 0.0
        %443 = vmatpush1.msra.mxu0 %v335
        %444 = vmatprep.subr.mxu0 0.0
        %445 = vmatpush1.msra.mxu0 %v336
        %446 = vmatprep.subr.mxu0 0.0
        %447 = vmatpush1.msra.mxu0 %v337
        %448 = vmatprep.subr.mxu0 0.0
        %449 = vmatpush1.msra.mxu0 0.0
        %450 = vmatprep.subr.mxu0 0.0
        %451 = vmatpush1.msra.mxu0 0.0
        %452 = vmatprep.subr.mxu0 0.0
        %453 = vmatpush1.msra.mxu0 0.0
        %454 = vmatprep.subr.mxu0 0.0
        %455 = vmatpush1.msra.mxu0 0.0
        %456 = vmatprep.subr.mxu0 0.0
        %457 = vmatpush1.msra.mxu0 0.0
        %458 = vmatprep.subr.mxu0 0.0
        %459 = vmatpush1.msra.mxu0 0.0
        %460 = vmatprep.subr.mxu0 0.0
        %461 = vmatpush1.msra.mxu0 0.0
        %462 = vmatprep.subr.mxu0 0.0
        %463 = vmatpush1.msra.mxu0 0.0
        %464 = vmatprep.subr.mxu0 0.0
        %465 = vmatpush1.msra.mxu0 0.0
        %466 = vmatprep.subr.mxu0 0.0
        %467 = vmatpush1.msra.mxu0 0.0
        %468 = vmatprep.subr.mxu0 0.0
        %469 = vmatpush1.msra.mxu0 0.0
        %470 = vmatprep.subr.mxu0 0.0
        %471 = vmatpush1.msra.mxu0 0.0
        %472 = vmatprep.subr.mxu0 0.0
        %473 = vmatpush1.msra.mxu0 0.0
        %474 = vmatprep.subr.mxu0 0.0
        %475 = vmatpush1.msra.mxu0 0.0
        %476 = vmatprep.subr.mxu0 0.0
        %477 = vmatpush1.msra.mxu0 0.0
        %478 = vmatprep.subr.mxu0 0.0
        %479 = vmatpush1.msra.mxu0 0.0
        %480 = vmatprep.subr.mxu0 0.0
        %481 = vmatpush1.msra.mxu0 0.0
        %482 = vmatprep.subr.mxu0 0.0
        %483 = vmatpush1.msra.mxu0 0.0
        %484 = vmatprep.subr.mxu0 0.0
        %485 = vmatpush1.msra.mxu0 0.0
        %486 = vmatprep.subr.mxu0 0.0
        %487 = vmatpush1.msra.mxu0 0.0
        %488 = vmatprep.subr.mxu0 0.0
        %489 = vmatpush1.msra.mxu0 0.0
        %490 = vmatprep.subr.mxu0 0.0
        %491 = vmatpush1.msra.mxu0 0.0
        %492 = vmatprep.subr.mxu0 0.0
        %493 = vmatpush1.msra.mxu0 0.0
        %494 = vmatprep.subr.mxu0 0.0
        %495 = vmatpush1.msra.mxu0 0.0
        %496 = vmatprep.mubr.f32.mxu0 0.0
        %497 = vmatmul.mubr.f32.gmra.mrb[0].mxu0 %v430
        %v498 = vpop.f32.mrb[0].mxu0
        %v499 = vadd.f32 0.0, %v498
        %v500 = vpop.f32.mrb[0].mxu0
        %501 = vdwg.mxu0
        %v503 = vsel %vm313, %v312, 0
        %v506 = vsel %vm313, %v499, 0
        %508 = vmatprep.subr.mxu0 0.0
        %509 = vmatpush1.xpose.msra.mxu0 %v506
        %510 = vmatprep.subr.mxu0 0.0
        %511 = vmatpush1.xpose.msra.mxu0 0.0
        %512 = vmatprep.subr.mxu0 0.0
        %513 = vmatpush1.xpose.msra.mxu0 0.0
        %514 = vmatprep.subr.mxu0 0.0
        %515 = vmatpush1.xpose.msra.mxu0 0.0
        %516 = vmatprep.subr.mxu0 0.0
        %517 = vmatpush1.xpose.msra.mxu0 0.0
        %518 = vmatprep.subr.mxu0 0.0
        %519 = vmatpush1.xpose.msra.mxu0 0.0
        %520 = vmatprep.subr.mxu0 0.0
        %521 = vmatpush1.xpose.msra.mxu0 0.0
        %522 = vmatprep.subr.mxu0 0.0
        %523 = vmatpush1.xpose.msra.mxu0 0.0
        %524 = vmatprep.subr.mxu0 0.0
        %525 = vmatpush1.xpose.msra.mxu0 0.0
        %526 = vmatprep.subr.mxu0 0.0
        %527 = vmatpush1.xpose.msra.mxu0 0.0
        %528 = vmatprep.subr.mxu0 0.0
        %529 = vmatpush1.xpose.msra.mxu0 0.0
        %530 = vmatprep.subr.mxu0 0.0
        %531 = vmatpush1.xpose.msra.mxu0 0.0
        %532 = vmatprep.subr.mxu0 0.0
        %533 = vmatpush1.xpose.msra.mxu0 0.0
        %534 = vmatprep.subr.mxu0 0.0
        %535 = vmatpush1.xpose.msra.mxu0 0.0
        %536 = vmatprep.subr.mxu0 0.0
        %537 = vmatpush1.xpose.msra.mxu0 0.0
        %538 = vmatprep.subr.mxu0 0.0
        %539 = vmatpush1.xpose.msra.mxu0 0.0
        %540 = vmatprep.subr.mxu0 0.0
        %541 = vmatpush1.xpose.msra.mxu0 0.0
        %542 = vmatprep.subr.mxu0 0.0
        %543 = vmatpush1.xpose.msra.mxu0 0.0
        %544 = vmatprep.subr.mxu0 0.0
        %545 = vmatpush1.xpose.msra.mxu0 0.0
        %546 = vmatprep.subr.mxu0 0.0
        %547 = vmatpush1.xpose.msra.mxu0 0.0
        %548 = vmatprep.subr.mxu0 0.0
        %549 = vmatpush1.xpose.msra.mxu0 0.0
        %550 = vmatprep.subr.mxu0 0.0
        %551 = vmatpush1.xpose.msra.mxu0 0.0
        %552 = vmatprep.subr.mxu0 0.0
        %553 = vmatpush1.xpose.msra.mxu0 0.0
        %554 = vmatprep.subr.mxu0 0.0
        %555 = vmatpush1.xpose.msra.mxu0 0.0
        %556 = vmatprep.subr.mxu0 0.0
        %557 = vmatpush1.xpose.msra.mxu0 0.0
        %558 = vmatprep.subr.mxu0 0.0
        %559 = vmatpush1.xpose.msra.mxu0 0.0
        %560 = vmatprep.subr.mxu0 0.0
        %561 = vmatpush1.xpose.msra.mxu0 0.0
        %562 = vmatprep.subr.mxu0 0.0
        %563 = vmatpush1.xpose.msra.mxu0 0.0
        %564 = vmatprep.subr.mxu0 0.0
        %565 = vmatpush1.xpose.msra.mxu0 0.0
        %566 = vmatprep.subr.mxu0 0.0
        %567 = vmatpush1.xpose.msra.mxu0 0.0
        %568 = vmatprep.subr.mxu0 0.0
        %569 = vmatpush1.xpose.msra.mxu0 0.0
        %570 = vmatprep.subr.mxu0 0.0
        %571 = vmatpush1.xpose.msra.mxu0 0.0
        %572 = vmatprep.mubr.f32.mxu0 0.0
        %573 = vmatmul.mubr.f32.gmra.mrb[0].mxu0 %v503
        %v574 = vpop.f32.mrb[0].mxu0
        %v575 = vadd.f32 0.0, %v574
        %v576 = vpop.f32.mrb[0].mxu0
        %577 = vdwg.mxu0
        %v578 = vmul.f32 %v575, 0.25
        %vm579 = vcmask 64512
        %v580 = vsel %vm579, %v578, -inf
        %v581 = vrot.slane %v580, 4
        %v582 = vmax.f32 %v580, %v581
        %v583 = vrot.slane %v582, 2
        %v584 = vmax.f32 %v582, %v583
        %v585 = vrot.slane %v584, 1
        %v586 = vmax.f32 %v584, %v585
        %v587 = vsub.f32 %v578, %v586
        %v588 = vmul.f32 %v587, 1.442695
        %v589 = vpow.pop %v588
        %v590 = vsel %vm579, %v589, 0.0
        %v591 = vrot.slane %v590, 4
        %v592 = vadd.f32 %v590, %v591
        %v593 = vrot.slane %v592, 2
        %v594 = vadd.f32 %v592, %v593
        %v595 = vrot.slane %v594, 1
        %v596 = vadd.f32 %v594, %v595
        %v597 = vrcp.pop %v596
        %v598 = vmul.f32 %v596, %v597
        %v599 = vsub.f32 2.0, %v598
        %v600 = vmul.f32 %v597, %v599
        %v601 = vmul.f32 %v589, %v600
        %602 = vxpose.xlu0.b32.start [1/16] %v601, 128
        %603 = vxpose.xlu0.b32.cont [2/16] 0.0, 128
        %604 = vxpose.xlu0.b32.cont [3/16] 0.0, 128
        %605 = vxpose.xlu0.b32.cont [4/16] 0.0, 128
        %606 = vxpose.xlu0.b32.cont [5/16] 0.0, 128
        %607 = vxpose.xlu0.b32.cont [6/16] 0.0, 128
        %608 = vxpose.xlu0.b32.cont [7/16] 0.0, 128
        %609 = vxpose.xlu0.b32.cont [8/16] 0.0, 128
        %610 = vxpose.xlu0.b32.cont [9/16] 0.0, 128
        %611 = vxpose.xlu0.b32.cont [10/16] 0.0, 128
        %612 = vxpose.xlu0.b32.cont [11/16] 0.0, 128
        %613 = vxpose.xlu0.b32.cont [12/16] 0.0, 128
        %614 = vxpose.xlu0.b32.cont [13/16] 0.0, 128
        %615 = vxpose.xlu0.b32.cont [14/16] 0.0, 128
        %616 = vxpose.xlu0.b32.cont [15/16] 0.0, 128
        %617 = vxpose.xlu0.b32.end [16/16] 0.0, 128
        %v618 = vpop.trf.xlu0
        %v619 = vpop.trf.xlu0
        %v620 = vpop.trf.xlu0
        %v621 = vpop.trf.xlu0
        %v622 = vpop.trf.xlu0
        %v623 = vpop.trf.xlu0
        %v624 = vpop.trf.xlu0
        %v625 = vpop.trf.xlu0
        %v626 = vpop.trf.xlu0
        %v627 = vpop.trf.xlu0
        %v628 = vpop.trf.xlu0
        %v629 = vpop.trf.xlu0
        %v630 = vpop.trf.xlu0
        %v631 = vpop.trf.xlu0
        %v632 = vpop.trf.xlu0
        %v633 = vpop.trf.xlu0
        %v635 = vsel %vm579, %v618, 0
        %637 = vmatprep.subr.mxu0 0.0
        %638 = vmatpush1.msra.mxu0 %v312
        %639 = vmatprep.subr.mxu0 0.0
        %640 = vmatpush1.msra.mxu0 0.0
        %641 = vmatprep.subr.mxu0 0.0
        %642 = vmatpush1.msra.mxu0 0.0
        %643 = vmatprep.subr.mxu0 0.0
        %644 = vmatpush1.msra.mxu0 0.0
        %645 = vmatprep.subr.mxu0 0.0
        %646 = vmatpush1.msra.mxu0 0.0
        %647 = vmatprep.subr.mxu0 0.0
        %648 = vmatpush1.msra.mxu0 0.0
        %649 = vmatprep.subr.mxu0 0.0
        %650 = vmatpush1.msra.mxu0 0.0
        %651 = vmatprep.subr.mxu0 0.0
        %652 = vmatpush1.msra.mxu0 0.0
        %653 = vmatprep.subr.mxu0 0.0
        %654 = vmatpush1.msra.mxu0 0.0
        %655 = vmatprep.subr.mxu0 0.0
        %656 = vmatpush1.msra.mxu0 0.0
        %657 = vmatprep.subr.mxu0 0.0
        %658 = vmatpush1.msra.mxu0 0.0
        %659 = vmatprep.subr.mxu0 0.0
        %660 = vmatpush1.msra.mxu0 0.0
        %661 = vmatprep.subr.mxu0 0.0
        %662 = vmatpush1.msra.mxu0 0.0
        %663 = vmatprep.subr.mxu0 0.0
        %664 = vmatpush1.msra.mxu0 0.0
        %665 = vmatprep.subr.mxu0 0.0
        %666 = vmatpush1.msra.mxu0 0.0
        %667 = vmatprep.subr.mxu0 0.0
        %668 = vmatpush1.msra.mxu0 0.0
        %669 = vmatprep.subr.mxu0 0.0
        %670 = vmatpush1.msra.mxu0 0.0
        %671 = vmatprep.subr.mxu0 0.0
        %672 = vmatpush1.msra.mxu0 0.0
        %673 = vmatprep.subr.mxu0 0.0
        %674 = vmatpush1.msra.mxu0 0.0
        %675 = vmatprep.subr.mxu0 0.0
        %676 = vmatpush1.msra.mxu0 0.0
        %677 = vmatprep.subr.mxu0 0.0
        %678 = vmatpush1.msra.mxu0 0.0
        %679 = vmatprep.subr.mxu0 0.0
        %680 = vmatpush1.msra.mxu0 0.0
        %681 = vmatprep.subr.mxu0 0.0
        %682 = vmatpush1.msra.mxu0 0.0
        %683 = vmatprep.subr.mxu0 0.0
        %684 = vmatpush1.msra.mxu0 0.0
        %685 = vmatprep.subr.mxu0 0.0
        %686 = vmatpush1.msra.mxu0 0.0
        %687 = vmatprep.subr.mxu0 0.0
        %688 = vmatpush1.msra.mxu0 0.0
        %689 = vmatprep.subr.mxu0 0.0
        %690 = vmatpush1.msra.mxu0 0.0
        %691 = vmatprep.subr.mxu0 0.0
        %692 = vmatpush1.msra.mxu0 0.0
        %693 = vmatprep.subr.mxu0 0.0
        %694 = vmatpush1.msra.mxu0 0.0
        %695 = vmatprep.subr.mxu0 0.0
        %696 = vmatpush1.msra.mxu0 0.0
        %697 = vmatprep.subr.mxu0 0.0
        %698 = vmatpush1.msra.mxu0 0.0
        %699 = vmatprep.subr.mxu0 0.0
        %700 = vmatpush1.msra.mxu0 0.0
        %701 = vmatprep.mubr.f32.mxu0 0.0
        %702 = vmatmul.mubr.f32.gmra.mrb[0].mxu0 %v635
        %v703 = vpop.f32.mrb[0].mxu0
        %v704 = vadd.f32 0.0, %v703
        %v705 = vpop.f32.mrb[0].mxu0
        %706 = vdwg.mxu0
        %v708 = vsel %vm313, %v704, 0
        %710 = vmatprep.subr.mxu0 0.0
        %711 = vmatpush1.msra.mxu0 %v338
        %712 = vmatprep.subr.mxu0 0.0
        %713 = vmatpush1.msra.mxu0 %v339
        %714 = vmatprep.subr.mxu0 0.0
        %715 = vmatpush1.msra.mxu0 %v340
        %716 = vmatprep.subr.mxu0 0.0
        %717 = vmatpush1.msra.mxu0 %v341
        %718 = vmatprep.subr.mxu0 0.0
        %719 = vmatpush1.msra.mxu0 0.0
        %720 = vmatprep.subr.mxu0 0.0
        %721 = vmatpush1.msra.mxu0 0.0
        %722 = vmatprep.subr.mxu0 0.0
        %723 = vmatpush1.msra.mxu0 0.0
        %724 = vmatprep.subr.mxu0 0.0
        %725 = vmatpush1.msra.mxu0 0.0
        %726 = vmatprep.subr.mxu0 0.0
        %727 = vmatpush1.msra.mxu0 0.0
        %728 = vmatprep.subr.mxu0 0.0
        %729 = vmatpush1.msra.mxu0 0.0
        %730 = vmatprep.subr.mxu0 0.0
        %731 = vmatpush1.msra.mxu0 0.0
        %732 = vmatprep.subr.mxu0 0.0
        %733 = vmatpush1.msra.mxu0 0.0
        %734 = vmatprep.subr.mxu0 0.0
        %735 = vmatpush1.msra.mxu0 0.0
        %736 = vmatprep.subr.mxu0 0.0
        %737 = vmatpush1.msra.mxu0 0.0
        %738 = vmatprep.subr.mxu0 0.0
        %739 = vmatpush1.msra.mxu0 0.0
        %740 = vmatprep.subr.mxu0 0.0
        %741 = vmatpush1.msra.mxu0 0.0
        %742 = vmatprep.subr.mxu0 0.0
        %743 = vmatpush1.msra.mxu0 0.0
        %744 = vmatprep.subr.mxu0 0.0
        %745 = vmatpush1.msra.mxu0 0.0
        %746 = vmatprep.subr.mxu0 0.0
        %747 = vmatpush1.msra.mxu0 0.0
        %748 = vmatprep.subr.mxu0 0.0
        %749 = vmatpush1.msra.mxu0 0.0
        %750 = vmatprep.subr.mxu0 0.0
        %751 = vmatpush1.msra.mxu0 0.0
        %752 = vmatprep.subr.mxu0 0.0
        %753 = vmatpush1.msra.mxu0 0.0
        %754 = vmatprep.subr.mxu0 0.0
        %755 = vmatpush1.msra.mxu0 0.0
        %756 = vmatprep.subr.mxu0 0.0
        %757 = vmatpush1.msra.mxu0 0.0
        %758 = vmatprep.subr.mxu0 0.0
        %759 = vmatpush1.msra.mxu0 0.0
        %760 = vmatprep.subr.mxu0 0.0
        %761 = vmatpush1.msra.mxu0 0.0
        %762 = vmatprep.subr.mxu0 0.0
        %763 = vmatpush1.msra.mxu0 0.0
        %764 = vmatprep.subr.mxu0 0.0
        %765 = vmatpush1.msra.mxu0 0.0
        %766 = vmatprep.subr.mxu0 0.0
        %767 = vmatpush1.msra.mxu0 0.0
        %768 = vmatprep.subr.mxu0 0.0
        %769 = vmatpush1.msra.mxu0 0.0
        %770 = vmatprep.subr.mxu0 0.0
        %771 = vmatpush1.msra.mxu0 0.0
        %772 = vmatprep.subr.mxu0 0.0
        %773 = vmatpush1.msra.mxu0 0.0
        %774 = vmatprep.mubr.f32.mxu0 0.0
        %775 = vmatmul.mubr.f32.gmra.mrb[0].mxu0 %v708
        %v776 = vpop.f32.mrb[0].mxu0
        %v777 = vadd.f32 0.0, %v776
        %v778 = vpop.f32.mrb[0].mxu0
        %779 = vdwg.mxu0
        %v780 = vmul.f32 %v777, %v325
        %v781 = vsel %vm428, %v780, 0.0
        %v782 = vrot.slane %v781, 4
        %v783 = vadd.f32 %v781, %v782
        %v784 = vrot.slane %v783, 2
        %v785 = vadd.f32 %v783, %v784
        %v786 = vrot.slane %v785, 1
        %v787 = vadd.f32 %v785, %v786
        %v789 = vsel %vm428, %v787, 0
        %791 = vmatprep.subr.mxu0 0.0
        %792 = vmatpush1.msra.mxu0 %v342
        %793 = vmatprep.subr.mxu0 0.0
        %794 = vmatpush1.msra.mxu0 %v343
        %795 = vmatprep.subr.mxu0 0.0
        %796 = vmatpush1.msra.mxu0 %v344
        %797 = vmatprep.subr.mxu0 0.0
        %798 = vmatpush1.msra.mxu0 %v345
        %799 = vmatprep.subr.mxu0 0.0
        %800 = vmatpush1.msra.mxu0 %v346
        %801 = vmatprep.subr.mxu0 0.0
        %802 = vmatpush1.msra.mxu0 %v347
        %803 = vmatprep.subr.mxu0 0.0
        %804 = vmatpush1.msra.mxu0 %v348
        %805 = vmatprep.subr.mxu0 0.0
        %806 = vmatpush1.msra.mxu0 %v349
        %807 = vmatprep.subr.mxu0 0.0
        %808 = vmatpush1.msra.mxu0 0.0
        %809 = vmatprep.subr.mxu0 0.0
        %810 = vmatpush1.msra.mxu0 0.0
        %811 = vmatprep.subr.mxu0 0.0
        %812 = vmatpush1.msra.mxu0 0.0
        %813 = vmatprep.subr.mxu0 0.0
        %814 = vmatpush1.msra.mxu0 0.0
        %815 = vmatprep.subr.mxu0 0.0
        %816 = vmatpush1.msra.mxu0 0.0
        %817 = vmatprep.subr.mxu0 0.0
        %818 = vmatpush1.msra.mxu0 0.0
        %819 = vmatprep.subr.mxu0 0.0
        %820 = vmatpush1.msra.mxu0 0.0
        %821 = vmatprep.subr.mxu0 0.0
        %822 = vmatpush1.msra.mxu0 0.0
        %823 = vmatprep.subr.mxu0 0.0
        %824 = vmatpush1.msra.mxu0 0.0
        %825 = vmatprep.subr.mxu0 0.0
        %826 = vmatpush1.msra.mxu0 0.0
        %827 = vmatprep.subr.mxu0 0.0
        %828 = vmatpush1.msra.mxu0 0.0
        %829 = vmatprep.subr.mxu0 0.0
        %830 = vmatpush1.msra.mxu0 0.0
        %831 = vmatprep.subr.mxu0 0.0
        %832 = vmatpush1.msra.mxu0 0.0
        %833 = vmatprep.subr.mxu0 0.0
        %834 = vmatpush1.msra.mxu0 0.0
        %835 = vmatprep.subr.mxu0 0.0
        %836 = vmatpush1.msra.mxu0 0.0
        %837 = vmatprep.subr.mxu0 0.0
        %838 = vmatpush1.msra.mxu0 0.0
        %839 = vmatprep.subr.mxu0 0.0
        %840 = vmatpush1.msra.mxu0 0.0
        %841 = vmatprep.subr.mxu0 0.0
        %842 = vmatpush1.msra.mxu0 0.0
        %843 = vmatprep.subr.mxu0 0.0
        %844 = vmatpush1.msra.mxu0 0.0
        %845 = vmatprep.subr.mxu0 0.0
        %846 = vmatpush1.msra.mxu0 0.0
        %847 = vmatprep.subr.mxu0 0.0
        %848 = vmatpush1.msra.mxu0 0.0
        %849 = vmatprep.subr.mxu0 0.0
        %850 = vmatpush1.msra.mxu0 0.0
        %851 = vmatprep.subr.mxu0 0.0
        %852 = vmatpush1.msra.mxu0 0.0
        %853 = vmatprep.subr.mxu0 0.0
        %854 = vmatpush1.msra.mxu0 0.0
        %855 = vmatprep.mubr.f32.mxu0 0.0
        %856 = vmatmul.mubr.f32.gmra.mrb[0].mxu0 %v789
        %v857 = vpop.f32.mrb[0].mxu0
        %v858 = vadd.f32 0.0, %v857
        %v859 = vpop.f32.mrb[0].mxu0
        %860 = vdwg.mxu0
        %862 = vrot.lane.b32.xlu0 %v858, 96
        %v863 = vpop.permute.xlu0 %862
        %v865 = vcombine.low %v858, %v863
        %v867 = vunpack.c.l.s4 1934713408
        %v868 = vunpack.c.0.s8 %v867
        %v869 = vlaneseq
        %v870 = vshrl.u32 %v869, 7
        %v871 = vsub.s32 %v868, %v870
        %v872 = vrot.slane %v865, %v871
        %v874 = vsel %vm313, %v872, 0
        %876 = vmatprep.subr.mxu0 0.0
        %877 = vmatpush1.xpose.msra.mxu0 %v874
        %878 = vmatprep.subr.mxu0 0.0
        %879 = vmatpush1.xpose.msra.mxu0 0.0
        %880 = vmatprep.subr.mxu0 0.0
        %881 = vmatpush1.xpose.msra.mxu0 0.0
        %882 = vmatprep.subr.mxu0 0.0
        %883 = vmatpush1.xpose.msra.mxu0 0.0
        %884 = vmatprep.subr.mxu0 0.0
        %885 = vmatpush1.xpose.msra.mxu0 0.0
        %886 = vmatprep.subr.mxu0 0.0
        %887 = vmatpush1.xpose.msra.mxu0 0.0
        %888 = vmatprep.subr.mxu0 0.0
        %889 = vmatpush1.xpose.msra.mxu0 0.0
        %890 = vmatprep.subr.mxu0 0.0
        %891 = vmatpush1.xpose.msra.mxu0 0.0
        %892 = vmatprep.subr.mxu0 0.0
        %893 = vmatpush1.xpose.msra.mxu0 0.0
        %894 = vmatprep.subr.mxu0 0.0
        %895 = vmatpush1.xpose.msra.mxu0 0.0
        %896 = vmatprep.subr.mxu0 0.0
        %897 = vmatpush1.xpose.msra.mxu0 0.0
        %898 = vmatprep.subr.mxu0 0.0
        %899 = vmatpush1.xpose.msra.mxu0 0.0
        %900 = vmatprep.subr.mxu0 0.0
        %901 = vmatpush1.xpose.msra.mxu0 0.0
        %902 = vmatprep.subr.mxu0 0.0
        %903 = vmatpush1.xpose.msra.mxu0 0.0
        %904 = vmatprep.subr.mxu0 0.0
        %905 = vmatpush1.xpose.msra.mxu0 0.0
        %906 = vmatprep.subr.mxu0 0.0
        %907 = vmatpush1.xpose.msra.mxu0 0.0
        %908 = vmatprep.subr.mxu0 0.0
        %909 = vmatpush1.xpose.msra.mxu0 0.0
        %910 = vmatprep.subr.mxu0 0.0
        %911 = vmatpush1.xpose.msra.mxu0 0.0
        %912 = vmatprep.subr.mxu0 0.0
        %913 = vmatpush1.xpose.msra.mxu0 0.0
        %914 = vmatprep.subr.mxu0 0.0
        %915 = vmatpush1.xpose.msra.mxu0 0.0
        %916 = vmatprep.subr.mxu0 0.0
        %917 = vmatpush1.xpose.msra.mxu0 0.0
        %918 = vmatprep.subr.mxu0 0.0
        %919 = vmatpush1.xpose.msra.mxu0 0.0
        %920 = vmatprep.subr.mxu0 0.0
        %921 = vmatpush1.xpose.msra.mxu0 0.0
        %922 = vmatprep.subr.mxu0 0.0
        %923 = vmatpush1.xpose.msra.mxu0 0.0
        %924 = vmatprep.subr.mxu0 0.0
        %925 = vmatpush1.xpose.msra.mxu0 0.0
        %926 = vmatprep.subr.mxu0 0.0
        %927 = vmatpush1.xpose.msra.mxu0 0.0
        %928 = vmatprep.subr.mxu0 0.0
        %929 = vmatpush1.xpose.msra.mxu0 0.0
        %930 = vmatprep.subr.mxu0 0.0
        %931 = vmatpush1.xpose.msra.mxu0 0.0
        %932 = vmatprep.subr.mxu0 0.0
        %933 = vmatpush1.xpose.msra.mxu0 0.0
        %934 = vmatprep.subr.mxu0 0.0
        %935 = vmatpush1.xpose.msra.mxu0 0.0
        %936 = vmatprep.subr.mxu0 0.0
        %937 = vmatpush1.xpose.msra.mxu0 0.0
        %938 = vmatprep.subr.mxu0 0.0
        %939 = vmatpush1.xpose.msra.mxu0 0.0
        %940 = vmatprep.mubr.f32.mxu0 0.0
        %941 = vmatmul.mubr.f32.gmra.mrb[0].mxu0 %v503
        %v942 = vpop.f32.mrb[0].mxu0
        %v943 = vadd.f32 0.0, %v942
        %v944 = vpop.f32.mrb[0].mxu0
        %945 = vdwg.mxu0
        %vm946 = vcmask 15360
        %947 = vst.msk [vmem:[%s311] sm:$0xff] %vm946, %v943
        %p948 = scmp.lt.s32.totalorder %s24, 1
        %s949 = scalar_select %p948, %s24, 1
        %s950 = smul.addr %s949, 8
        %s951 = scalar_lea.vmem %s6, %s950
        %s952 = sand.u32 %s189, 1
        %s953 = scalar_lea.sflag [#allocation4], %s952
        %s954 = sand.u32 %s189, 1
        %s955 = scalar_lea.vmem [#allocation7], %s954
        // Predicated region
        $region53: #{tpu_custom_call.1} parent=43 // pred_check
          %p956 = pneg %p173
        $region54: #{tpu_custom_call.1} parent=43 // pred_check_branch
          %958 = sbr.rel (%p956) target = $region56
        $region55: #{tpu_custom_call.1} parent=43 // pred_region
          _
        $region56: #{tpu_custom_call.1} parent=43 // pred_fallthru
          _
        // Predicated region
        $region57: #{tpu_custom_call.1} parent=43 // pred_check
          %p959 = pneg %p199
        $region58: #{tpu_custom_call.1} parent=43 // pred_check_branch
          %961 = sbr.rel (%p959) target = $region60
        $region59: #{tpu_custom_call.1} parent=43 // pred_region
          %s963 = ssub.s32 16, 16
          %964 = vsyncadd %s953, %s963
          %s965 = smul.addr %s24, 16
          %s966 = scalar_lea.hbm %s7, %s965
          %s968 = sshll.u32 %s955, 4
          %s969 = int_to_ptr.vmem [resolvable:$true] %s968
          %971 = dma.vmem_to_hbm [thread:$0]  %s969, 16, %s966, %s953
        $region60: #{tpu_custom_call.1} parent=43 // pred_fallthru
          _
      $region44: #{tpu_custom_call.1} parent=5 // pred_fallthru
        _
      %p972 = scmp.le.s32.totalorder 2, %s19
      // Predicated region
      $region61: #{tpu_custom_call.1} parent=5 // pred_check
        %p973 = pneg %p972
      $region62: #{tpu_custom_call.1} parent=5 // pred_check_branch
        %975 = sbr.rel (%p973) target = $region64
      $region63: #{tpu_custom_call.1} parent=5 // pred_region
        %s976 = ssub.s32 %s19, 2
        // Predicated region
        $region65: #{tpu_custom_call.1} parent=63 // pred_check
          %p977 = pneg %p179
        $region66: #{tpu_custom_call.1} parent=63 // pred_check_branch
          %979 = sbr.rel (%p977) target = $region68
        $region67: #{tpu_custom_call.1} parent=63 // pred_region
          %p980 = scmp.lt.s32.totalorder %s25, 1
          %s981 = scalar_select %p980, %s25, 1
          %s982 = smul.addr %s981, 8
          %s983 = scalar_lea.vmem %s6, %s982
        $region68: #{tpu_custom_call.1} parent=63 // pred_fallthru
          _
        // Predicated region
        $region69: #{tpu_custom_call.1} parent=63 // pred_check
          %p984 = pneg %p205
        $region70: #{tpu_custom_call.1} parent=63 // pred_check_branch
          %986 = sbr.rel (%p984) target = $region72
        $region71: #{tpu_custom_call.1} parent=63 // pred_region
          %s987 = sand.u32 %s190, 1
          %s988 = scalar_lea.sflag [#allocation4], %s987
          %s989 = sand.u32 %s190, 1
          %s990 = scalar_lea.vmem [#allocation7], %s989
          %991 = dma.done %s988, 16
        $region72: #{tpu_custom_call.1} parent=63 // pred_fallthru
          _
      $region64: #{tpu_custom_call.1} parent=5 // pred_fallthru
        _
    $region6: #{tpu_custom_call.1} parent=1 // loop_footer
      %s23 = sadd.s32 1, %s19
    $region7: #{tpu_custom_call.1} parent=1 // loop_footer_branch
      %18 = sbr.rel target = $region3
    $region8: #{tpu_custom_call.1} parent=1 // loop_exit
      _
    %992 = vsyncpa [#allocation3], 1
    %s993 = scalar_lea.sflag [#allocation3], 1
    %994 = vsyncpa %s993, 1
    %995 = vsyncpa [#allocation6], 1
    %996 = vsyncpa [#allocation4], 1
    %s997 = scalar_lea.sflag [#allocation4], 1
    %998 = vsyncpa %s997, 1

</llo_original>
